<compile_context>
chip_gen: v6e
topology: v6e:2x2x1
jax: 0.10.0
libtpu: 0.0.40
codegen_flags: <defaults>
</compile_context>

<pallas_src>
import jax
import jax.numpy as jnp
from jax.experimental import pallas as pl
from jax.experimental.pallas import tpu as pltpu

NEG_INF = jnp.float32(-1e30)


def _round_up(x, m):
    return (x + m - 1) // m * m


# -----------------------------------------------------------------------------
# Fused kernel: unfold -> one packed matmul -> bias/mask -> ReLU -> max-pool ->
# FC matmul (bias folded into the weights).
# -----------------------------------------------------------------------------
def fused_textcnn_kernel(x_ref, wu_ref, bm_ref, fw_ref, o_ref):
    # x_ref : (TB, S, E)      bf16  batch tile of embeddings
    # wu_ref: (max_fs*E, Fp)  bf16  packed conv weights for all branches/taps
    # bm_ref: (S, Fp)         f32   conv bias + (-1e30 mask) + constant-1 column
    # fw_ref: (Fp, Op)        f32   FC weights (one row carries the FC bias)
    # o_ref : (TB, Op)        f32   lane-dense (padded) logits
    TB, S, E = x_ref.shape
    KE, Fp = wu_ref.shape
    max_fs = KE // E

    # Up-cast to f32 so the layout plumbing (slice / concat / reshape) stays on
    # native (8,128) f32 tiles; down-cast to bf16 only at the MXU operand.
    x = x_ref[...].astype(jnp.float32).reshape(TB * S, E)

    # Unfold: flat row (b*S + l) of x_unf holds [x[b,l], x[b,l+1], ...].
    # Rows whose window runs off the end of a sequence pick up garbage/zero
    # data, but those positions are masked to -1e30 by bm_ref before the
    # max-pool, and taps beyond a branch's filter size have zero weights.
    taps = [x]
    for k in range(1, max_fs):
        shifted = jnp.concatenate(
            [x[k:, :], jnp.zeros((k, E), dtype=x.dtype)], axis=0)
        taps.append(shifted)
    x_unf = jnp.concatenate(taps, axis=1)                       # (TB*S, max_fs*E)

    # Single MXU matmul for every branch / tap / position (bf16 in, f32 acc).
    scores = jnp.dot(x_unf.astype(jnp.bfloat16), wu_ref[...],
                     preferred_element_type=jnp.float32)        # (TB*S, Fp)
    scores = scores.reshape(TB, S, Fp) + bm_ref[...]            # bias + mask
    scores = jnp.maximum(scores, 0.0)                           # ReLU
    pooled = jnp.max(scores, axis=1)                            # (TB, Fp) max-pool

    # Final linear layer. FC bias rides on the constant-1 pooled column.
    out = jnp.dot(pooled, fw_ref[...], preferred_element_type=jnp.float32)
    o_ref[...] = out.astype(o_ref.dtype)


# -----------------------------------------------------------------------------
# Host-side packing of parameters into the fused layout.
# -----------------------------------------------------------------------------
def pack_params(params, filter_sizes, seq_len):
    conv_w = params["conv_w"]
    E = conv_w[0].shape[1]
    F = conv_w[0].shape[-1]
    nb = len(filter_sizes)
    max_fs = max(filter_sizes)
    S = seq_len
    O = params["fc_w"].shape[1]
    Fp = _round_up(nb * F + 1, 128)   # +1: constant-one column for the FC bias
    Op = _round_up(O, 128)            # lane-dense output

    wu = jnp.zeros((max_fs * E, Fp), jnp.float32)
    bm = jnp.full((S, Fp), NEG_INF, jnp.float32)
    for b, (fs, w, bias) in enumerate(zip(filter_sizes, conv_w, params["conv_b"])):
        for k in range(fs):
            wu = wu.at[k * E:(k + 1) * E, b * F:(b + 1) * F].set(w[k])
        L = S - fs + 1                      # valid sliding positions
        bm = bm.at[:L, b * F:(b + 1) * F].set(bias.reshape(1, F))
    bm = bm.at[:, nb * F].set(1.0)          # pooled[:, nb*F] == 1.0 always

    fw = jnp.zeros((Fp, Op), jnp.float32)
    fw = fw.at[:nb * F, :O].set(params["fc_w"])
    fw = fw.at[nb * F, :O].set(params["fc_b"][0])   # FC bias folded in
    return wu.astype(jnp.bfloat16), bm, fw


# -----------------------------------------------------------------------------
# Wrapper
# -----------------------------------------------------------------------------
def cnn_model_forward(x, params, filter_sizes, *, batch_tile=8):
    """Equivalent of CNNModel.forward in eval mode (dropout = identity)."""
    # TODO(synk): nn.Dropout is identity in eval mode; training-mode dropout not implemented.
    B, S, E = x.shape
    O = params["fc_w"].shape[1]
    max_fs = max(filter_sizes)
    if S < max_fs:
        raise ValueError("seq_len must be >= max(filter_sizes)")

    wu, bm, fw = pack_params(params, filter_sizes, S)
    KE, Fp = wu.shape
    Op = fw.shape[1]

    TB = min(batch_tile, B)
    B_pad = _round_up(B, TB)
    x_in = x.astype(jnp.bfloat16)
    if B_pad != B:
        x_in = jnp.pad(x_in, ((0, B_pad - B), (0, 0), (0, 0)))

    out = pl.pallas_call(
        fused_textcnn_kernel,
        out_shape=jax.ShapeDtypeStruct((B_pad, Op), jnp.float32),
        grid=(B_pad // TB,),
        in_specs=[
            pl.BlockSpec((TB, S, E), lambda i: (i, 0, 0)),
            pl.BlockSpec((KE, Fp), lambda i: (0, 0)),
            pl.BlockSpec((S, Fp), lambda i: (0, 0)),
            pl.BlockSpec((Fp, Op), lambda i: (0, 0)),
        ],
        out_specs=pl.BlockSpec((TB, Op), lambda i: (i, 0)),
        compiler_params=pltpu.CompilerParams(
            dimension_semantics=("parallel",)),
    )(x_in, wu, bm, fw)
    return out[:B, :O]


# -----------------------------------------------------------------------------
# Deterministic parameter construction + pure-JAX reference check
# -----------------------------------------------------------------------------
def make_params(key, embedding_dim, num_filters, filter_sizes, output_dim):
    params = {"conv_w": [], "conv_b": []}
    for fs in filter_sizes:
        key, k1, k2 = jax.random.split(key, 3)
        params["conv_w"].append(
            0.1 * jax.random.normal(k1, (fs, embedding_dim, num_filters), jnp.float32)
        )
        params["conv_b"].append(
            0.1 * jax.random.normal(k2, (1, num_filters), jnp.float32)
        )
    key, k1, k2 = jax.random.split(key, 3)
    k_in = len(filter_sizes) * num_filters
    params["fc_w"] = 0.1 * jax.random.normal(k1, (k_in, output_dim), jnp.float32)
    params["fc_b"] = 0.1 * jax.random.normal(k2, (1, output_dim), jnp.float32)
    return params


def reference_forward(x, params, filter_sizes, *, matmul_dtype=jnp.float32):
    B, S, E = x.shape
    xq = x.astype(matmul_dtype)
    pooled = []
    for fs, w, b in zip(filter_sizes, params["conv_w"], params["conv_b"]):
        F = w.shape[-1]
        L = S - fs + 1
        wq = w.astype(matmul_dtype)
        scores = jnp.zeros((B, L, F), jnp.float32)
        for k in range(fs):
            scores = scores + jnp.einsum(
                "ble,ef->blf", xq[:, k:k + L, :], wq[k],
                preferred_element_type=jnp.float32)
        scores = jax.nn.relu(scores + b.reshape(1, 1, F))
        pooled.append(jnp.max(scores, axis=1))
    cat = jnp.concatenate(pooled, axis=1)
    return cat @ params["fc_w"] + params["fc_b"]


if __name__ == "__main__":
    # Small shapes consistent with the module's forward.
    batch, seq_len, embedding_dim = 16, 8, 32
    num_filters, filter_sizes, output_dim = 16, (2, 3, 4), 4

    key = jax.random.PRNGKey(0)
    key, kx = jax.random.split(key)
    x = jax.random.normal(kx, (batch, seq_len, embedding_dim), jnp.float32)

    params = make_params(key, embedding_dim, num_filters, filter_sizes, output_dim)

    out = cnn_model_forward(x, params, filter_sizes)
    out = jax.block_until_ready(out)
    assert out.shape == (batch, output_dim)

    # Tight check vs a reference that mirrors the kernel's bf16-operand /
    # f32-accumulate matmuls.
    ref_bf16 = reference_forward(x, params, filter_sizes, matmul_dtype=jnp.bfloat16)
    max_diff_bf16 = float(jnp.max(jnp.abs(out - ref_bf16)))
    assert jnp.allclose(out, ref_bf16, atol=5e-3, rtol=5e-3), (
        "max diff vs bf16 ref:", max_diff_bf16)

    # Loose check vs the full-f32 (PyTorch-equivalent) forward.
    ref_f32 = reference_forward(x, params, filter_sizes, matmul_dtype=jnp.float32)
    max_diff_f32 = float(jnp.max(jnp.abs(out - ref_f32)))
    assert jnp.allclose(out, ref_f32, atol=5e-2, rtol=5e-2), (
        "max diff vs f32 ref:", max_diff_f32)

    print("KERNEL_OK")
</pallas_src>

<mosaic_0001>
module attributes {stable_mosaic.version = 11 : i64} {
  func.func @fused_textcnn_kernel(%arg0: i32, %arg1: memref<8x8x32xbf16, #tpu.memory_space<vmem>>, %arg2: memref<128x128xbf16, #tpu.memory_space<vmem>>, %arg3: memref<8x128xf32, #tpu.memory_space<vmem>>, %arg4: memref<128x128xf32, #tpu.memory_space<vmem>>, %arg5: memref<8x128xf32, #tpu.memory_space<vmem>>) attributes {dimension_semantics = [#tpu.dimension_semantics<parallel>], iteration_bounds = array<i64: 2>, scalar_prefetch = 0 : i64, scratch_operands = 0 : i64, tpu.core_type = #tpu.core_type<tc>, window_params = [{transform_indices = @transform_0, window_bounds = array<i64: 8, 8, 32>}, {pipeline_mode = #tpu.pipeline_mode<synchronous>, transform_indices = @transform_1, window_bounds = array<i64: 128, 128>}, {pipeline_mode = #tpu.pipeline_mode<synchronous>, transform_indices = @transform_2, window_bounds = array<i64: 8, 128>}, {pipeline_mode = #tpu.pipeline_mode<synchronous>, transform_indices = @transform_3, window_bounds = array<i64: 128, 128>}, {transform_indices = @transform_4, window_bounds = array<i64: 8, 128>}]} {
    %c0 = arith.constant 0 : index
    %c0_0 = arith.constant 0 : index
    %c0_1 = arith.constant 0 : index
    %0 = vector.load %arg1[%c0, %c0_0, %c0_1] : memref<8x8x32xbf16, #tpu.memory_space<vmem>>, vector<8x8x32xbf16>
    %1 = arith.extf %0 : vector<8x8x32xbf16> to vector<8x8x32xf32>
    %2 = vector.shape_cast %1 : vector<8x8x32xf32> to vector<64x32xf32>
    %3 = vector.extract_strided_slice %2 {offsets = [1, 0], sizes = [63, 32], strides = [1, 1]} : vector<64x32xf32> to vector<63x32xf32>
    %cst = arith.constant 0.000000e+00 : f32
    %4 = vector.broadcast %cst : f32 to vector<1x32xf32>
    %5 = tpu.concatenate %3, %4 in 0 : vector<63x32xf32>, vector<1x32xf32> -> vector<64x32xf32>
    %6 = vector.extract_strided_slice %2 {offsets = [2, 0], sizes = [62, 32], strides = [1, 1]} : vector<64x32xf32> to vector<62x32xf32>
    %cst_2 = arith.constant 0.000000e+00 : f32
    %7 = vector.broadcast %cst_2 : f32 to vector<2x32xf32>
    %8 = tpu.concatenate %6, %7 in 0 : vector<62x32xf32>, vector<2x32xf32> -> vector<64x32xf32>
    %9 = vector.extract_strided_slice %2 {offsets = [3, 0], sizes = [61, 32], strides = [1, 1]} : vector<64x32xf32> to vector<61x32xf32>
    %cst_3 = arith.constant 0.000000e+00 : f32
    %10 = vector.broadcast %cst_3 : f32 to vector<3x32xf32>
    %11 = tpu.concatenate %9, %10 in 0 : vector<61x32xf32>, vector<3x32xf32> -> vector<64x32xf32>
    %12 = tpu.concatenate %2, %5, %8, %11 in 1 : vector<64x32xf32>, vector<64x32xf32>, vector<64x32xf32>, vector<64x32xf32> -> vector<64x128xf32>
    %13 = arith.truncf %12 : vector<64x128xf32> to vector<64x128xbf16>
    %c0_4 = arith.constant 0 : index
    %c0_5 = arith.constant 0 : index
    %14 = vector.load %arg2[%c0_4, %c0_5] : memref<128x128xbf16, #tpu.memory_space<vmem>>, vector<128x128xbf16>
    %cst_6 = arith.constant dense<0.000000e+00> : vector<64x128xf32>
    %15 = tpu.matmul %13, %14, %cst_6 {dimension_numbers = #tpu.dot_dimension_numbers<[1], [0], [0], [1], [0, 0, 1, 1], [], []>} : vector<64x128xbf16>, vector<128x128xbf16>, vector<64x128xf32> -> vector<64x128xf32>
    %16 = vector.shape_cast %15 : vector<64x128xf32> to vector<8x8x128xf32>
    %c0_7 = arith.constant 0 : index
    %c0_8 = arith.constant 0 : index
    %17 = vector.load %arg3[%c0_7, %c0_8] : memref<8x128xf32, #tpu.memory_space<vmem>>, vector<8x128xf32>
    %18 = vector.shape_cast %17 : vector<8x128xf32> to vector<1x8x128xf32>
    %19 = vector.broadcast %18 : vector<1x8x128xf32> to vector<8x8x128xf32>
    %20 = arith.addf %16, %19 : vector<8x8x128xf32>
    %cst_9 = arith.constant 0.000000e+00 : f32
    %21 = vector.broadcast %cst_9 : f32 to vector<8x8x128xf32>
    %22 = arith.maximumf %20, %21 : vector<8x8x128xf32>
    %cst_10 = arith.constant dense<0xFF800000> : vector<8x128xf32>
    %23 = vector.multi_reduction <maximumf>, %22, %cst_10 [1] : vector<8x8x128xf32> to vector<8x128xf32>
    %c0_11 = arith.constant 0 : index
    %c0_12 = arith.constant 0 : index
    %24 = vector.load %arg4[%c0_11, %c0_12] : memref<128x128xf32, #tpu.memory_space<vmem>>, vector<128x128xf32>
    %cst_13 = arith.constant dense<0.000000e+00> : vector<8x128xf32>
    %25 = tpu.matmul %23, %24, %cst_13 {dimension_numbers = #tpu.dot_dimension_numbers<[1], [0], [0], [1], [0, 0, 1, 1], [], []>} : vector<8x128xf32>, vector<128x128xf32>, vector<8x128xf32> -> vector<8x128xf32>
    %c0_14 = arith.constant 0 : index
    %c0_15 = arith.constant 0 : index
    %26 = vector.load %arg5[%c0_14, %c0_15] : memref<8x128xf32, #tpu.memory_space<vmem>>, vector<8x128xf32>
    tpu.vector_store %arg5[%c0_14, %c0_15], %25 {strides = array<i32>} : memref<8x128xf32, #tpu.memory_space<vmem>>, vector<8x128xf32>,
    return
  }
  func.func @transform_0(%arg0: i32) -> (i32, i32, i32) {
    %c0_i32 = arith.constant 0 : i32
    %c0_i32_0 = arith.constant 0 : i32
    %c0_i32_1 = arith.constant 0 : i32
    return %arg0, %c0_i32, %c0_i32_0 : i32, i32, i32
  }
  func.func @transform_1(%arg0: i32) -> (i32, i32) {
    %c0_i32 = arith.constant 0 : i32
    %c0_i32_0 = arith.constant 0 : i32
    %c0_i32_1 = arith.constant 0 : i32
    return %c0_i32, %c0_i32_0 : i32, i32
  }
  func.func @transform_2(%arg0: i32) -> (i32, i32) {
    %c0_i32 = arith.constant 0 : i32
    %c0_i32_0 = arith.constant 0 : i32
    %c0_i32_1 = arith.constant 0 : i32
    return %c0_i32, %c0_i32_0 : i32, i32
  }
  func.func @transform_3(%arg0: i32) -> (i32, i32) {
    %c0_i32 = arith.constant 0 : i32
    %c0_i32_0 = arith.constant 0 : i32
    %c0_i32_1 = arith.constant 0 : i32
    return %c0_i32, %c0_i32_0 : i32, i32
  }
  func.func @transform_4(%arg0: i32) -> (i32, i32) {
    %c0_i32 = arith.constant 0 : i32
    %c0_i32_0 = arith.constant 0 : i32
    return %arg0, %c0_i32 : i32, i32
  }
}

</mosaic_0001>

<llo_original>
// kernel: tpu_custom_call.1
$region0: #{tpu_custom_call.1}
  #allocation0 [shape = 'u32[]', space=smem, size = 0x4, offset = 0x4, fixed_abs, tag = 'smem constant byte address 0x4 - core index']
  #allocation1 [shape = 'u32[144,128]{1,0:T(1,128)}', space=vmem, size = 0x12000, scoped, tag = 'internal scratch']
  %s0 = inlined_call_operand.hbm [shape: bf16[16,8,32], index: 0, kind: input, shape index: {}]
  %s1 = inlined_call_operand.hbm [shape: bf16[128,128], index: 1, kind: input, shape index: {}]
  %s2 = inlined_call_operand.hbm [shape: f32[8,128], index: 2, kind: input, shape index: {}]
  %s3 = inlined_call_operand.hbm [shape: f32[128,128], index: 3, kind: input, shape index: {}]
  %s4 = inlined_call_operand.hbm [shape: f32[16,128], index: 4, kind: output, shape index: {}]
  %s5 = sld [smem:[#allocation0]]
  $region65: #{tpu_custom_call.1} parent=0
    _
  %s7 = ssub.s32 1, %s5
  %s8 = scalar_select 0, %s7, %s5
  $region1: #{tpu_custom_call.1} parent=0
    #allocation2 [shape = 'u8[32768]{0}', space=vmem, size = 0x8000, scoped, tag = 'input window, operand 0']
    #allocation3 [shape = 's32[2]{0}', space=sflag, size = 0x8, scoped, tag = 'scoped memory for tpu_custom_call.1']
    #allocation4 [shape = 's32[2]{0}', space=sflag, size = 0x8, scoped, tag = 'scoped memory for tpu_custom_call.1']
    #allocation5 [shape = 'u8[32768]{0}', space=vmem, size = 0x8000, scoped, tag = 'input window, operand 1, single buffered']
    #allocation6 [shape = 's32[1]{0}', space=sflag, size = 0x4, scoped, tag = 'scoped memory for tpu_custom_call.1']
    #allocation7 [shape = 'u8[4096]{0}', space=vmem, size = 0x1000, scoped, tag = 'input window, operand 2, single buffered']
    #allocation8 [shape = 'u8[65536]{0}', space=vmem, size = 0x10000, scoped, tag = 'input window, operand 3, single buffered']
    #allocation9 [shape = 's32[1]{0}', space=sflag, size = 0x4, scoped, tag = 'scoped memory for tpu_custom_call.1']
    #allocation10 [shape = 'u8[8192]{0}', space=vmem, size = 0x2000, scoped, tag = 'output window, operand 0']
    %9 = vsyncpa [#allocation3], 0
    %s10 = scalar_lea.sflag [#allocation3], 1
    %11 = vsyncpa %s10, 0
    %12 = vsyncpa [#allocation6], 0
    %13 = vsyncpa [#allocation9], 0
    %14 = vsyncpa [#allocation4], 0
    %s15 = scalar_lea.sflag [#allocation4], 1
    %16 = vsyncpa %s15, 0
    loop: start=0, step=1, limit=4
    $region2: #{tpu_custom_call.1} parent=1 // loop_pre_header
      _
    $region3: #{tpu_custom_call.1} parent=1 // loop_header
      %s18 = sphi 0, %s22
      %p19 = scmp.ge.s32.totalorder %s18, 4
      %s28 = sphi 0, %s30
      %s31 = sphi 0, %s28
      %s32 = sphi 0, %s31
      %s48 = sphi 0, %s32
      %s52 = sphi 0, %s52
      %s54 = sphi 0, %s52
      %s55 = sphi 0, %s54
      %s69 = sphi 0, %s55
      %s73 = sphi 0, %s73
      %s75 = sphi 0, %s73
      %s76 = sphi 0, %s75
      %s90 = sphi 0, %s76
      %s94 = sphi 0, %s94
      %s96 = sphi 0, %s94
      %s97 = sphi 0, %s96
      %s111 = sphi 0, %s97
      %s117 = sphi 0, %s119
      %s120 = sphi 0, %s117
      %s121 = sphi 0, %s120
      %s137 = sphi 0, %s121
    $region4: #{tpu_custom_call.1} parent=1 // loop_header_branch
      %21 = sbr.rel (%p19) target = $region8
    $region5: #{tpu_custom_call.1} parent=1 // loop_body
      %s23 = ssub.s32 %s18, 1
      %s24 = ssub.s32 %s18, 2
      %s25 = sadd.s32 %s18, 1
      %s26 = ssub.s32 %s18, %s25
      %p27 = scmp.eq.s32.totalorder %s26, 0
      %s29 = sadd.s32 %s28, 1
      %s30 = scalar_select %p27, %s28, %s29
      %p33 = pneg %p27
      %p34 = scmp.eq.s32.totalorder %s18, 1
      %p35 = por %p33, %p34
      %p36 = scmp.ne.s32.totalorder %s28, %s31
      %p37 = scmp.eq.s32.totalorder %s18, 0
      %p38 = por %p36, %p37
      %p39 = scmp.ne.s32.totalorder %s28, %s31
      %p40 = scmp.eq.s32.totalorder %s23, 1
      %p41 = por %p39, %p40
      %p42 = scmp.ne.s32.totalorder %s31, %s32
      %p43 = scmp.eq.s32.totalorder %s23, 0
      %p44 = por %p42, %p43
      %p45 = scmp.ne.s32.totalorder %s31, %s32
      %p46 = scmp.eq.s32.totalorder %s24, 1
      %p47 = por %p45, %p46
      %p49 = scmp.ne.s32.totalorder %s32, %s48
      %p50 = scmp.eq.s32.totalorder %s24, 0
      %p51 = por %p49, %p50
      %s53 = sadd.s32 %s52, 1
      %p56 = scmp.eq.s32.totalorder %s18, 1
      %p57 = scmp.ne.s32.totalorder %s52, %s54
      %p58 = scmp.eq.s32.totalorder %s18, 0
      %p59 = por %p57, %p58
      %p60 = scmp.ne.s32.totalorder %s52, %s54
      %p61 = scmp.eq.s32.totalorder %s23, 1
      %p62 = por %p60, %p61
      %p63 = scmp.ne.s32.totalorder %s54, %s55
      %p64 = scmp.eq.s32.totalorder %s23, 0
      %p65 = por %p63, %p64
      %p66 = scmp.ne.s32.totalorder %s54, %s55
      %p67 = scmp.eq.s32.totalorder %s24, 1
      %p68 = por %p66, %p67
      %p70 = scmp.ne.s32.totalorder %s55, %s69
      %p71 = scmp.eq.s32.totalorder %s24, 0
      %p72 = por %p70, %p71
      %s74 = sadd.s32 %s73, 1
      %p77 = scmp.eq.s32.totalorder %s18, 1
      %p78 = scmp.ne.s32.totalorder %s73, %s75
      %p79 = scmp.eq.s32.totalorder %s18, 0
      %p80 = por %p78, %p79
      %p81 = scmp.ne.s32.totalorder %s73, %s75
      %p82 = scmp.eq.s32.totalorder %s23, 1
      %p83 = por %p81, %p82
      %p84 = scmp.ne.s32.totalorder %s75, %s76
      %p85 = scmp.eq.s32.totalorder %s23, 0
      %p86 = por %p84, %p85
      %p87 = scmp.ne.s32.totalorder %s75, %s76
      %p88 = scmp.eq.s32.totalorder %s24, 1
      %p89 = por %p87, %p88
      %p91 = scmp.ne.s32.totalorder %s76, %s90
      %p92 = scmp.eq.s32.totalorder %s24, 0
      %p93 = por %p91, %p92
      %s95 = sadd.s32 %s94, 1
      %p98 = scmp.eq.s32.totalorder %s18, 1
      %p99 = scmp.ne.s32.totalorder %s94, %s96
      %p100 = scmp.eq.s32.totalorder %s18, 0
      %p101 = por %p99, %p100
      %p102 = scmp.ne.s32.totalorder %s94, %s96
      %p103 = scmp.eq.s32.totalorder %s23, 1
      %p104 = por %p102, %p103
      %p105 = scmp.ne.s32.totalorder %s96, %s97
      %p106 = scmp.eq.s32.totalorder %s23, 0
      %p107 = por %p105, %p106
      %p108 = scmp.ne.s32.totalorder %s96, %s97
      %p109 = scmp.eq.s32.totalorder %s24, 1
      %p110 = por %p108, %p109
      %p112 = scmp.ne.s32.totalorder %s97, %s111
      %p113 = scmp.eq.s32.totalorder %s24, 0
      %p114 = por %p112, %p113
      %s115 = ssub.s32 %s18, %s25
      %p116 = scmp.eq.s32.totalorder %s115, 0
      %s118 = sadd.s32 %s117, 1
      %s119 = scalar_select %p116, %s117, %s118
      %p122 = pneg %p116
      %p123 = scmp.eq.s32.totalorder %s18, 1
      %p124 = por %p122, %p123
      %p125 = scmp.ne.s32.totalorder %s117, %s120
      %p126 = scmp.eq.s32.totalorder %s18, 0
      %p127 = por %p125, %p126
      %p128 = scmp.ne.s32.totalorder %s117, %s120
      %p129 = scmp.eq.s32.totalorder %s23, 1
      %p130 = por %p128, %p129
      %p131 = scmp.ne.s32.totalorder %s120, %s121
      %p132 = scmp.eq.s32.totalorder %s23, 0
      %p133 = por %p131, %p132
      %p134 = scmp.ne.s32.totalorder %s120, %s121
      %p135 = scmp.eq.s32.totalorder %s24, 1
      %p136 = por %p134, %p135
      %p138 = scmp.ne.s32.totalorder %s121, %s137
      %p139 = scmp.eq.s32.totalorder %s24, 0
      %p140 = por %p138, %p139
      %p141 = scmp.le.s32.totalorder 1, %s18
      %p142 = scmp.lt.s32.totalorder %s18, 3
      %p143 = pnand %p141, %p142
      %p144 = pneg %p143
      // Predicated region
      $region9: #{tpu_custom_call.1} parent=5 // pred_check
        _
      $region10: #{tpu_custom_call.1} parent=5 // pred_check_branch
        %146 = sbr.rel (%p143) target = $region12
      $region11: #{tpu_custom_call.1} parent=5 // pred_region
        %s147 = ssub.s32 %s18, 1
        // Predicated region
        $region13: #{tpu_custom_call.1} parent=11 // pred_check
          %p148 = pneg %p65
        $region14: #{tpu_custom_call.1} parent=11 // pred_check_branch
          %150 = sbr.rel (%p148) target = $region16
        $region15: #{tpu_custom_call.1} parent=11 // pred_region
          %s152 = ssub.s32 1024, 1024
          %153 = vsyncadd [#allocation6], %s152
          %s154 = sshll.u32 [#allocation5], 4
          %s155 = int_to_ptr.vmem [resolvable:$true] %s154
          %160 = dma.hbm_to_vmem [thread:$0]  %s1, 1024, %s155, [#allocation6], 64, 64, 4
        $region16: #{tpu_custom_call.1} parent=11 // pred_fallthru
          _
        // Predicated region
        $region17: #{tpu_custom_call.1} parent=11 // pred_check
          %p161 = pneg %p86
        $region18: #{tpu_custom_call.1} parent=11 // pred_check_branch
          %163 = sbr.rel (%p161) target = $region20
        $region19: #{tpu_custom_call.1} parent=11 // pred_region
          %s165 = ssub.s32 128, 128
          %166 = vsyncadd [#allocation6], %s165
          %s168 = sshll.u32 [#allocation7], 4
          %s169 = int_to_ptr.vmem [resolvable:$true] %s168
          %171 = dma.hbm_to_vmem [thread:$0]  %s2, 128, %s169, [#allocation6]
        $region20: #{tpu_custom_call.1} parent=11 // pred_fallthru
          _
        // Predicated region
        $region21: #{tpu_custom_call.1} parent=11 // pred_check
          %p172 = pneg %p107
        $region22: #{tpu_custom_call.1} parent=11 // pred_check_branch
          %174 = sbr.rel (%p172) target = $region24
        $region23: #{tpu_custom_call.1} parent=11 // pred_region
          %s176 = ssub.s32 2048, 2048
          %177 = vsyncadd [#allocation9], %s176
          %s178 = sshll.u32 [#allocation8], 4
          %s179 = int_to_ptr.vmem [resolvable:$true] %s178
          %184 = dma.hbm_to_vmem [thread:$0]  %s3, 2048, %s179, [#allocation9], 128, 128, 8
        $region24: #{tpu_custom_call.1} parent=11 // pred_fallthru
          _
      $region12: #{tpu_custom_call.1} parent=5 // pred_fallthru
        _
      %p185 = scmp.lt.s32.totalorder %s18, 2
      // Predicated region
      $region25: #{tpu_custom_call.1} parent=5 // pred_check
        %p186 = pneg %p185
      $region26: #{tpu_custom_call.1} parent=5 // pred_check_branch
        %188 = sbr.rel (%p186) target = $region28
      $region27: #{tpu_custom_call.1} parent=5 // pred_region
        // Predicated region
        $region29: #{tpu_custom_call.1} parent=27 // pred_check
          %p189 = pneg %p38
        $region30: #{tpu_custom_call.1} parent=27 // pred_check_branch
          %191 = sbr.rel (%p189) target = $region32
        $region31: #{tpu_custom_call.1} parent=27 // pred_region
          %s192 = sand.u32 %s28, 1
          %s193 = scalar_lea.sflag [#allocation3], %s192
          %s194 = sand.u32 %s28, 1
          %s195 = smul.addr %s194, 32
          %s196 = scalar_lea.vmem [#allocation2], %s195
          %s197 = smul.u32 8, %s18
          %s199 = ssub.s32 512, 512
          %200 = vsyncadd %s193, %s199
          %s201 = smul.addr %s197, 64
          %s202 = scalar_lea.hbm %s0, %s201
          %s203 = sshll.u32 %s196, 4
          %s204 = int_to_ptr.vmem [resolvable:$true] %s203
          %209 = dma.hbm_to_vmem [thread:$0]  %s202, 512, %s204, %s193, 64, 64, 4
        $region32: #{tpu_custom_call.1} parent=27 // pred_fallthru
          _
      $region28: #{tpu_custom_call.1} parent=5 // pred_fallthru
        _
      %p210 = scmp.le.s32.totalorder 1, %s18
      %p211 = scmp.lt.s32.totalorder %s18, 3
      %p212 = pnand %p210, %p211
      %p213 = pneg %p212
      // Predicated region
      $region33: #{tpu_custom_call.1} parent=5 // pred_check
        _
      $region34: #{tpu_custom_call.1} parent=5 // pred_check_branch
        %215 = sbr.rel (%p212) target = $region36
      $region35: #{tpu_custom_call.1} parent=5 // pred_region
        %s216 = ssub.s32 %s18, 1
        %s217 = sand.u32 %s31, 1
        %s218 = scalar_lea.sflag [#allocation3], %s217
        %s219 = sand.u32 %s31, 1
        %s220 = smul.addr %s219, 32
        %s221 = scalar_lea.vmem [#allocation2], %s220
        // Predicated region
        $region37: #{tpu_custom_call.1} parent=35 // pred_check
          %p222 = pneg %p44
        $region38: #{tpu_custom_call.1} parent=35 // pred_check_branch
          %224 = sbr.rel (%p222) target = $region40
        $region39: #{tpu_custom_call.1} parent=35 // pred_region
          %225 = dma.done %s218, 512
        $region40: #{tpu_custom_call.1} parent=35 // pred_fallthru
          _
        // Predicated region
        $region41: #{tpu_custom_call.1} parent=35 // pred_check
          %p226 = pneg %p65
        $region42: #{tpu_custom_call.1} parent=35 // pred_check_branch
          %228 = sbr.rel (%p226) target = $region44
        $region43: #{tpu_custom_call.1} parent=35 // pred_region
          %229 = dma.done [#allocation6], 1024
        $region44: #{tpu_custom_call.1} parent=35 // pred_fallthru
          _
        // Predicated region
        $region45: #{tpu_custom_call.1} parent=35 // pred_check
          %p230 = pneg %p86
        $region46: #{tpu_custom_call.1} parent=35 // pred_check_branch
          %232 = sbr.rel (%p230) target = $region48
        $region47: #{tpu_custom_call.1} parent=35 // pred_region
          %233 = dma.done [#allocation6], 128
        $region48: #{tpu_custom_call.1} parent=35 // pred_fallthru
          _
        // Predicated region
        $region49: #{tpu_custom_call.1} parent=35 // pred_check
          %p234 = pneg %p107
        $region50: #{tpu_custom_call.1} parent=35 // pred_check_branch
          %236 = sbr.rel (%p234) target = $region52
        $region51: #{tpu_custom_call.1} parent=35 // pred_region
          %237 = dma.done [#allocation9], 2048
        $region52: #{tpu_custom_call.1} parent=35 // pred_fallthru
          _
        %s238 = sand.u32 %s31, 1
        %s239 = scalar_lea.sflag [#allocation3], %s238
        %s240 = sand.u32 %s31, 1
        %s241 = smul.addr %s240, 32
        %s242 = scalar_lea.vmem [#allocation2], %s241
        %p243 = pneg %p44
        %p244 = pneg %p41
        %p245 = pneg %p65
        %p246 = pneg %p62
        %p247 = pneg %p86
        %p248 = pneg %p83
        %p249 = pneg %p107
        %p250 = pneg %p104
        %p251 = pneg %p133
        %p252 = pneg %p130
        %s253 = sand.u32 %s120, 1
        %s254 = scalar_lea.sflag [#allocation4], %s253
        %s255 = sand.u32 %s120, 1
        %s256 = smul.addr %s255, 8
        %s257 = scalar_lea.vmem [#allocation10], %s256
        %s258 = smul.u32 8, %s23
        %v260 = vld [vmem:[%s221] sm:$0xf]
        %v261 = vld [vmem:[%s221 + $0x4] sm:$0xf]
        %v262 = vld [vmem:[%s221 + $0x8] sm:$0xf]
        %v263 = vld [vmem:[%s221 + $0xc] sm:$0xf]
        %v264 = vld [vmem:[%s221 + $0x10] sm:$0xf]
        %v265 = vld [vmem:[%s221 + $0x14] sm:$0xf]
        %v266 = vld [vmem:[%s221 + $0x18] sm:$0xf]
        %v267 = vld [vmem:[%s221 + $0x1c] sm:$0xf]
        %v268 = vunpack.c.l.bf16 %v260
        %v269 = vunpack.c.l.bf16 %v261
        %v270 = vunpack.c.l.bf16 %v262
        %v271 = vunpack.c.l.bf16 %v263
        %v272 = vunpack.c.l.bf16 %v264
        %v273 = vunpack.c.l.bf16 %v265
        %v274 = vunpack.c.l.bf16 %v266
        %v275 = vunpack.c.l.bf16 %v267
        %vm284 = vcmask 1046528
        %v285 = vrot.slane %v268, 1
        %v286 = vrot.slane %v269, 1
        %v287 = vsel %vm284, %v285, %v286
        %v288 = vrot.slane %v270, 1
        %v289 = vsel %vm284, %v286, %v288
        %v290 = vrot.slane %v271, 1
        %v291 = vsel %vm284, %v288, %v290
        %v292 = vrot.slane %v272, 1
        %v293 = vsel %vm284, %v290, %v292
        %v294 = vrot.slane %v273, 1
        %v295 = vsel %vm284, %v292, %v294
        %v296 = vrot.slane %v274, 1
        %v297 = vsel %vm284, %v294, %v296
        %v298 = vrot.slane %v275, 1
        %v299 = vsel %vm284, %v296, %v298
        %v301 = vsel %vm284, %v298, 0.0
        %vm302 = vcmask 1045504
        %v303 = vrot.slane %v268, 2
        %v304 = vrot.slane %v269, 2
        %v305 = vsel %vm302, %v303, %v304
        %v306 = vrot.slane %v270, 2
        %v307 = vsel %vm302, %v304, %v306
        %v308 = vrot.slane %v271, 2
        %v309 = vsel %vm302, %v306, %v308
        %v310 = vrot.slane %v272, 2
        %v311 = vsel %vm302, %v308, %v310
        %v312 = vrot.slane %v273, 2
        %v313 = vsel %vm302, %v310, %v312
        %v314 = vrot.slane %v274, 2
        %v315 = vsel %vm302, %v312, %v314
        %v316 = vrot.slane %v275, 2
        %v317 = vsel %vm302, %v314, %v316
        %v319 = vsel %vm302, %v316, 0.0
        %vm320 = vcmask 1044480
        %v321 = vrot.slane %v268, 3
        %v322 = vrot.slane %v269, 3
        %v323 = vsel %vm320, %v321, %v322
        %v324 = vrot.slane %v270, 3
        %v325 = vsel %vm320, %v322, %v324
        %v326 = vrot.slane %v271, 3
        %v327 = vsel %vm320, %v324, %v326
        %v328 = vrot.slane %v272, 3
        %v329 = vsel %vm320, %v326, %v328
        %v330 = vrot.slane %v273, 3
        %v331 = vsel %vm320, %v328, %v330
        %v332 = vrot.slane %v274, 3
        %v333 = vsel %vm320, %v330, %v332
        %v334 = vrot.slane %v275, 3
        %v335 = vsel %vm320, %v332, %v334
        %v337 = vsel %vm320, %v334, 0.0
        %339 = vrot.lane.b32.xlu0 %v287, 32
        %v340 = vpop.permute.xlu0 %339
        %341 = vrot.lane.b32.xlu0 %v289, 32
        %v342 = vpop.permute.xlu0 %341
        %343 = vrot.lane.b32.xlu0 %v291, 32
        %v344 = vpop.permute.xlu0 %343
        %345 = vrot.lane.b32.xlu0 %v293, 32
        %v346 = vpop.permute.xlu0 %345
        %347 = vrot.lane.b32.xlu0 %v295, 32
        %v348 = vpop.permute.xlu0 %347
        %349 = vrot.lane.b32.xlu0 %v297, 32
        %v350 = vpop.permute.xlu0 %349
        %351 = vrot.lane.b32.xlu0 %v299, 32
        %v352 = vpop.permute.xlu0 %351
        %353 = vrot.lane.b32.xlu0 %v301, 32
        %v354 = vpop.permute.xlu0 %353
        %364 = vrot.lane.b32.xlu0 %v305, 64
        %v365 = vpop.permute.xlu0 %364
        %366 = vrot.lane.b32.xlu0 %v307, 64
        %v367 = vpop.permute.xlu0 %366
        %368 = vrot.lane.b32.xlu0 %v309, 64
        %v369 = vpop.permute.xlu0 %368
        %370 = vrot.lane.b32.xlu0 %v311, 64
        %v371 = vpop.permute.xlu0 %370
        %372 = vrot.lane.b32.xlu0 %v313, 64
        %v373 = vpop.permute.xlu0 %372
        %374 = vrot.lane.b32.xlu0 %v315, 64
        %v375 = vpop.permute.xlu0 %374
        %376 = vrot.lane.b32.xlu0 %v317, 64
        %v377 = vpop.permute.xlu0 %376
        %378 = vrot.lane.b32.xlu0 %v319, 64
        %v379 = vpop.permute.xlu0 %378
        %389 = vrot.lane.b32.xlu0 %v323, 96
        %v390 = vpop.permute.xlu0 %389
        %391 = vrot.lane.b32.xlu0 %v325, 96
        %v392 = vpop.permute.xlu0 %391
        %393 = vrot.lane.b32.xlu0 %v327, 96
        %v394 = vpop.permute.xlu0 %393
        %395 = vrot.lane.b32.xlu0 %v329, 96
        %v396 = vpop.permute.xlu0 %395
        %397 = vrot.lane.b32.xlu0 %v331, 96
        %v398 = vpop.permute.xlu0 %397
        %399 = vrot.lane.b32.xlu0 %v333, 96
        %v400 = vpop.permute.xlu0 %399
        %401 = vrot.lane.b32.xlu0 %v335, 96
        %v402 = vpop.permute.xlu0 %401
        %403 = vrot.lane.b32.xlu0 %v337, 96
        %v404 = vpop.permute.xlu0 %403
        %vm413 = vcmask 261120
        %v414 = vsel %vm413, %v268, %v340
        %v415 = vsel %vm413, %v269, %v342
        %v416 = vsel %vm413, %v270, %v344
        %v417 = vsel %vm413, %v271, %v346
        %v418 = vsel %vm413, %v272, %v348
        %v419 = vsel %vm413, %v273, %v350
        %v420 = vsel %vm413, %v274, %v352
        %v421 = vsel %vm413, %v275, %v354
        %vm422 = vcmask 523264
        %v423 = vsel %vm422, %v414, %v365
        %v424 = vsel %vm422, %v415, %v367
        %v425 = vsel %vm422, %v416, %v369
        %v426 = vsel %vm422, %v417, %v371
        %v427 = vsel %vm422, %v418, %v373
        %v428 = vsel %vm422, %v419, %v375
        %v429 = vsel %vm422, %v420, %v377
        %v430 = vsel %vm422, %v421, %v379
        %vm431 = vcmask 785408
        %v432 = vsel %vm431, %v423, %v390
        %v433 = vsel %vm431, %v424, %v392
        %v434 = vsel %vm431, %v425, %v394
        %v435 = vsel %vm431, %v426, %v396
        %v436 = vsel %vm431, %v427, %v398
        %v437 = vsel %vm431, %v428, %v400
        %v438 = vsel %vm431, %v429, %v402
        %v439 = vsel %vm431, %v430, %v404
        %v440 = vpack.c.bf16 %v433, %v432
        %v441 = vpack.c.bf16 %v435, %v434
        %v442 = vpack.c.bf16 %v437, %v436
        %v443 = vpack.c.bf16 %v439, %v438
        %v444 = vld [vmem:[#allocation5] sm:$0xf]
        %v445 = vld [vmem:[#allocation5 + $0x4] sm:$0xf]
        %v446 = vld [vmem:[#allocation5 + $0x8] sm:$0xf]
        %v447 = vld [vmem:[#allocation5 + $0xc] sm:$0xf]
        %v448 = vld [vmem:[#allocation5 + $0x10] sm:$0xf]
        %v449 = vld [vmem:[#allocation5 + $0x14] sm:$0xf]
        %v450 = vld [vmem:[#allocation5 + $0x18] sm:$0xf]
        %v451 = vld [vmem:[#allocation5 + $0x1c] sm:$0xf]
        %v452 = vld [vmem:[#allocation5 + $0x20] sm:$0xf]
        %v453 = vld [vmem:[#allocation5 + $0x24] sm:$0xf]
        %v454 = vld [vmem:[#allocation5 + $0x28] sm:$0xf]
        %v455 = vld [vmem:[#allocation5 + $0x2c] sm:$0xf]
        %v456 = vld [vmem:[#allocation5 + $0x30] sm:$0xf]
        %v457 = vld [vmem:[#allocation5 + $0x34] sm:$0xf]
        %v458 = vld [vmem:[#allocation5 + $0x38] sm:$0xf]
        %v459 = vld [vmem:[#allocation5 + $0x3c] sm:$0xf]
        %v476 = vunpack.c.l.b16 %v444
        %v477 = vunpack.c.l.b16 %v445
        %v478 = vunpack.c.l.b16 %v446
        %v479 = vunpack.c.l.b16 %v447
        %v480 = vunpack.c.l.b16 %v448
        %v481 = vunpack.c.l.b16 %v449
        %v482 = vunpack.c.l.b16 %v450
        %v483 = vunpack.c.l.b16 %v451
        %v484 = vunpack.c.l.b16 %v452
        %v485 = vunpack.c.l.b16 %v453
        %v486 = vunpack.c.l.b16 %v454
        %v487 = vunpack.c.l.b16 %v455
        %v488 = vunpack.c.l.b16 %v456
        %v489 = vunpack.c.l.b16 %v457
        %v490 = vunpack.c.l.b16 %v458
        %v491 = vunpack.c.l.b16 %v459
        %v492 = vpack.c.b16 %v477, %v476
        %v493 = vpack.c.b16 %v479, %v478
        %v494 = vpack.c.b16 %v481, %v480
        %v495 = vpack.c.b16 %v483, %v482
        %v496 = vpack.c.b16 %v485, %v484
        %v497 = vpack.c.b16 %v487, %v486
        %v498 = vpack.c.b16 %v489, %v488
        %v499 = vpack.c.b16 %v491, %v490
        %508 = vmatprep.subr.bf16.mxu0 0
        %509 = vmatpush1.bf16.msra.mxu0 %v499
        %510 = vmatprep.subr.bf16.mxu0 0
        %511 = vmatpush1.bf16.msra.mxu0 %v498
        %512 = vmatprep.subr.bf16.mxu0 0
        %513 = vmatpush1.bf16.msra.mxu0 %v497
        %514 = vmatprep.subr.bf16.mxu0 0
        %515 = vmatpush1.bf16.msra.mxu0 %v496
        %516 = vmatprep.subr.bf16.mxu0 0
        %517 = vmatpush1.bf16.msra.mxu0 %v495
        %518 = vmatprep.subr.bf16.mxu0 0
        %519 = vmatpush1.bf16.msra.mxu0 %v494
        %520 = vmatprep.subr.bf16.mxu0 0
        %521 = vmatpush1.bf16.msra.mxu0 %v493
        %522 = vmatprep.subr.bf16.mxu0 0
        %523 = vmatpush1.bf16.msra.mxu0 %v492
        %524 = vmatprep.subr.bf16.mxu0 0
        %525 = vmatpush2.bf16.msra.mxu0 0
        %526 = vmatprep.subr.bf16.mxu0 0
        %527 = vmatpush2.bf16.msra.mxu0 0
        %528 = vmatprep.subr.bf16.mxu0 0
        %529 = vmatpush2.bf16.msra.mxu0 0
        %530 = vmatprep.subr.bf16.mxu0 0
        %531 = vmatpush2.bf16.msra.mxu0 0
        %532 = vmatprep.subr.bf16.mxu0 0
        %533 = vmatpush2.bf16.msra.mxu0 0
        %534 = vmatprep.subr.bf16.mxu0 0
        %535 = vmatpush2.bf16.msra.mxu0 0
        %536 = vmatprep.subr.bf16.mxu0 0
        %537 = vmatpush2.bf16.msra.mxu0 0
        %538 = vmatprep.subr.bf16.mxu0 0
        %539 = vmatpush2.bf16.msra.mxu0 0
        %540 = vmatprep.mubr.bf16.mxu0 0
        %541 = vmatmul.mubr.bf16.gmra.mxu0 %v440
        %v542 = vpop.f32.mrf.mxu0
        %v543 = vadd.f32 0.0, %v542
        %v544 = vpop.f32.mrf.mxu0
        %v545 = vpop.f32.mrf.mxu0
        %v546 = vadd.f32 0.0, %v545
        %v547 = vpop.f32.mrf.mxu0
        %548 = vmatprep.mubr.bf16.mxu0 0
        %549 = vmatmul.mubr.bf16.gmra.mxu0 %v441
        %v550 = vpop.f32.mrf.mxu0
        %v551 = vadd.f32 0.0, %v550
        %v552 = vpop.f32.mrf.mxu0
        %v553 = vpop.f32.mrf.mxu0
        %v554 = vadd.f32 0.0, %v553
        %v555 = vpop.f32.mrf.mxu0
        %556 = vmatprep.mubr.bf16.mxu0 0
        %557 = vmatmul.mubr.bf16.gmra.mxu0 %v442
        %v558 = vpop.f32.mrf.mxu0
        %v559 = vadd.f32 0.0, %v558
        %v560 = vpop.f32.mrf.mxu0
        %v561 = vpop.f32.mrf.mxu0
        %v562 = vadd.f32 0.0, %v561
        %v563 = vpop.f32.mrf.mxu0
        %564 = vmatprep.mubr.bf16.mxu0 0
        %565 = vmatmul.mubr.bf16.gmra.mxu0 %v443
        %v566 = vpop.f32.mrf.mxu0
        %v567 = vadd.f32 0.0, %v566
        %v568 = vpop.f32.mrf.mxu0
        %v569 = vpop.f32.mrf.mxu0
        %v570 = vadd.f32 0.0, %v569
        %v571 = vpop.f32.mrf.mxu0
        %572 = vdwg.mxu0
        %v573 = vld [vmem:[#allocation7] sm:$0xff]
        %v574 = vadd.f32 %v543, %v573
        %v575 = vadd.f32 %v546, %v573
        %v576 = vadd.f32 %v551, %v573
        %v577 = vadd.f32 %v554, %v573
        %v578 = vadd.f32 %v559, %v573
        %v579 = vadd.f32 %v562, %v573
        %v580 = vadd.f32 %v567, %v573
        %v581 = vadd.f32 %v570, %v573
        %v582 = vmax.f32 %v574, 0.0
        %v583 = vmax.f32 %v575, 0.0
        %v584 = vmax.f32 %v576, 0.0
        %v585 = vmax.f32 %v577, 0.0
        %v586 = vmax.f32 %v578, 0.0
        %v587 = vmax.f32 %v579, 0.0
        %v588 = vmax.f32 %v580, 0.0
        %v589 = vmax.f32 %v581, 0.0
        %v590 = vrot.slane %v582, 4
        %v591 = vmax.f32 %v582, %v590
        %v592 = vrot.slane %v591, 2
        %v593 = vmax.f32 %v591, %v592
        %v594 = vrot.slane %v593, 1
        %v595 = vmax.f32 %v593, %v594
        %v596 = vrot.slane %v583, 4
        %v597 = vmax.f32 %v583, %v596
        %v598 = vrot.slane %v597, 2
        %v599 = vmax.f32 %v597, %v598
        %v600 = vrot.slane %v599, 1
        %v601 = vmax.f32 %v599, %v600
        %v602 = vrot.slane %v584, 4
        %v603 = vmax.f32 %v584, %v602
        %v604 = vrot.slane %v603, 2
        %v605 = vmax.f32 %v603, %v604
        %v606 = vrot.slane %v605, 1
        %v607 = vmax.f32 %v605, %v606
        %v608 = vrot.slane %v585, 4
        %v609 = vmax.f32 %v585, %v608
        %v610 = vrot.slane %v609, 2
        %v611 = vmax.f32 %v609, %v610
        %v612 = vrot.slane %v611, 1
        %v613 = vmax.f32 %v611, %v612
        %v614 = vrot.slane %v586, 4
        %v615 = vmax.f32 %v586, %v614
        %v616 = vrot.slane %v615, 2
        %v617 = vmax.f32 %v615, %v616
        %v618 = vrot.slane %v617, 1
        %v619 = vmax.f32 %v617, %v618
        %v620 = vrot.slane %v587, 4
        %v621 = vmax.f32 %v587, %v620
        %v622 = vrot.slane %v621, 2
        %v623 = vmax.f32 %v621, %v622
        %v624 = vrot.slane %v623, 1
        %v625 = vmax.f32 %v623, %v624
        %v626 = vrot.slane %v588, 4
        %v627 = vmax.f32 %v588, %v626
        %v628 = vrot.slane %v627, 2
        %v629 = vmax.f32 %v627, %v628
        %v630 = vrot.slane %v629, 1
        %v631 = vmax.f32 %v629, %v630
        %v632 = vrot.slane %v589, 4
        %v633 = vmax.f32 %v589, %v632
        %v634 = vrot.slane %v633, 2
        %v635 = vmax.f32 %v633, %v634
        %v636 = vrot.slane %v635, 1
        %v637 = vmax.f32 %v635, %v636
        %v638 = vld [vmem:[#allocation8] sm:$0xff]
        %v639 = vld [vmem:[#allocation8 + $0x8] sm:$0xff]
        %v640 = vld [vmem:[#allocation8 + $0x10] sm:$0xff]
        %v641 = vld [vmem:[#allocation8 + $0x18] sm:$0xff]
        %v642 = vld [vmem:[#allocation8 + $0x20] sm:$0xff]
        %v643 = vld [vmem:[#allocation8 + $0x28] sm:$0xff]
        %v644 = vld [vmem:[#allocation8 + $0x30] sm:$0xff]
        %v645 = vld [vmem:[#allocation8 + $0x38] sm:$0xff]
        %v646 = vld [vmem:[#allocation8 + $0x40] sm:$0xff]
        %v647 = vld [vmem:[#allocation8 + $0x48] sm:$0xff]
        %v648 = vld [vmem:[#allocation8 + $0x50] sm:$0xff]
        %v649 = vld [vmem:[#allocation8 + $0x58] sm:$0xff]
        %v650 = vld [vmem:[#allocation8 + $0x60] sm:$0xff]
        %v651 = vld [vmem:[#allocation8 + $0x68] sm:$0xff]
        %v652 = vld [vmem:[#allocation8 + $0x70] sm:$0xff]
        %v653 = vld [vmem:[#allocation8 + $0x78] sm:$0xff]
        %vm662 = vcmask 1041409
        %v663 = vsel %vm662, %v601, %v595
        %vm664 = vcmask 1042434
        %v665 = vsel %vm664, %v607, %v663
        %vm666 = vcmask 1043459
        %v667 = vsel %vm666, %v613, %v665
        %vm668 = vcmask 1044484
        %v669 = vsel %vm668, %v619, %v667
        %vm670 = vcmask 1045509
        %v671 = vsel %vm670, %v625, %v669
        %vm672 = vcmask 1046534
        %v673 = vsel %vm672, %v631, %v671
        %vm674 = vcmask 1047559
        %v675 = vsel %vm674, %v637, %v673
        %677 = vmatprep.subr.mxu0 0.0
        %678 = vmatpush1.msra.mxu0 %v653
        %679 = vmatprep.subr.mxu0 0.0
        %680 = vmatpush1.msra.mxu0 %v652
        %681 = vmatprep.subr.mxu0 0.0
        %682 = vmatpush1.msra.mxu0 %v651
        %683 = vmatprep.subr.mxu0 0.0
        %684 = vmatpush1.msra.mxu0 %v650
        %685 = vmatprep.subr.mxu0 0.0
        %686 = vmatpush1.msra.mxu0 %v649
        %687 = vmatprep.subr.mxu0 0.0
        %688 = vmatpush1.msra.mxu0 %v648
        %689 = vmatprep.subr.mxu0 0.0
        %690 = vmatpush1.msra.mxu0 %v647
        %691 = vmatprep.subr.mxu0 0.0
        %692 = vmatpush1.msra.mxu0 %v646
        %693 = vmatprep.subr.mxu0 0.0
        %694 = vmatpush1.msra.mxu0 %v645
        %695 = vmatprep.subr.mxu0 0.0
        %696 = vmatpush1.msra.mxu0 %v644
        %697 = vmatprep.subr.mxu0 0.0
        %698 = vmatpush1.msra.mxu0 %v643
        %699 = vmatprep.subr.mxu0 0.0
        %700 = vmatpush1.msra.mxu0 %v642
        %701 = vmatprep.subr.mxu0 0.0
        %702 = vmatpush1.msra.mxu0 %v641
        %703 = vmatprep.subr.mxu0 0.0
        %704 = vmatpush1.msra.mxu0 %v640
        %705 = vmatprep.subr.mxu0 0.0
        %706 = vmatpush1.msra.mxu0 %v639
        %707 = vmatprep.subr.mxu0 0.0
        %708 = vmatpush1.msra.mxu0 %v638
        %709 = vmatprep.subr.mxu0 0.0
        %710 = vmatpush2.msra.mxu0 0.0
        %711 = vmatprep.subr.mxu0 0.0
        %712 = vmatpush2.msra.mxu0 0.0
        %713 = vmatprep.subr.mxu0 0.0
        %714 = vmatpush2.msra.mxu0 0.0
        %715 = vmatprep.subr.mxu0 0.0
        %716 = vmatpush2.msra.mxu0 0.0
        %717 = vmatprep.subr.mxu0 0.0
        %718 = vmatpush2.msra.mxu0 0.0
        %719 = vmatprep.subr.mxu0 0.0
        %720 = vmatpush2.msra.mxu0 0.0
        %721 = vmatprep.subr.mxu0 0.0
        %722 = vmatpush2.msra.mxu0 0.0
        %723 = vmatprep.subr.mxu0 0.0
        %724 = vmatpush2.msra.mxu0 0.0
        %725 = vmatprep.subr.mxu0 0.0
        %726 = vmatpush2.msra.mxu0 0.0
        %727 = vmatprep.subr.mxu0 0.0
        %728 = vmatpush2.msra.mxu0 0.0
        %729 = vmatprep.subr.mxu0 0.0
        %730 = vmatpush2.msra.mxu0 0.0
        %731 = vmatprep.subr.mxu0 0.0
        %732 = vmatpush2.msra.mxu0 0.0
        %733 = vmatprep.subr.mxu0 0.0
        %734 = vmatpush2.msra.mxu0 0.0
        %735 = vmatprep.subr.mxu0 0.0
        %736 = vmatpush2.msra.mxu0 0.0
        %737 = vmatprep.subr.mxu0 0.0
        %738 = vmatpush2.msra.mxu0 0.0
        %739 = vmatprep.subr.mxu0 0.0
        %740 = vmatpush2.msra.mxu0 0.0
        %741 = vmatprep.mubr.f32.mxu0 0.0
        %742 = vmatmul.mubr.f32.gmra.mxu0 %v675
        %v743 = vpop.f32.mrf.mxu0
        %v744 = vadd.f32 0.0, %v743
        %v745 = vpop.f32.mrf.mxu0
        %746 = vdwg.mxu0
        %747 = vst [vmem:[%s257] sm:$0xff] %v744
        %s748 = sand.u32 %s120, 1
        %s749 = scalar_lea.sflag [#allocation4], %s748
        %s750 = sand.u32 %s120, 1
        %s751 = smul.addr %s750, 8
        %s752 = scalar_lea.vmem [#allocation10], %s751
        // Predicated region
        $region53: #{tpu_custom_call.1} parent=35 // pred_check
          %p753 = pneg %p130
        $region54: #{tpu_custom_call.1} parent=35 // pred_check_branch
          %755 = sbr.rel (%p753) target = $region56
        $region55: #{tpu_custom_call.1} parent=35 // pred_region
          %s757 = ssub.s32 128, 128
          %758 = vsyncadd %s749, %s757
          %s759 = smul.addr %s23, 128
          %s760 = scalar_lea.hbm %s4, %s759
          %s762 = sshll.u32 %s752, 4
          %s763 = int_to_ptr.vmem [resolvable:$true] %s762
          %765 = dma.vmem_to_hbm [thread:$0]  %s763, 128, %s760, %s749
        $region56: #{tpu_custom_call.1} parent=35 // pred_fallthru
          _
      $region36: #{tpu_custom_call.1} parent=5 // pred_fallthru
        _
      %p766 = scmp.le.s32.totalorder 2, %s18
      // Predicated region
      $region57: #{tpu_custom_call.1} parent=5 // pred_check
        %p767 = pneg %p766
      $region58: #{tpu_custom_call.1} parent=5 // pred_check_branch
        %769 = sbr.rel (%p767) target = $region60
      $region59: #{tpu_custom_call.1} parent=5 // pred_region
        %s770 = ssub.s32 %s18, 2
        // Predicated region
        $region61: #{tpu_custom_call.1} parent=59 // pred_check
          %p771 = pneg %p136
        $region62: #{tpu_custom_call.1} parent=59 // pred_check_branch
          %773 = sbr.rel (%p771) target = $region64
        $region63: #{tpu_custom_call.1} parent=59 // pred_region
          %s774 = sand.u32 %s121, 1
          %s775 = scalar_lea.sflag [#allocation4], %s774
          %s776 = sand.u32 %s121, 1
          %s777 = smul.addr %s776, 8
          %s778 = scalar_lea.vmem [#allocation10], %s777
          %779 = dma.done %s775, 128
        $region64: #{tpu_custom_call.1} parent=59 // pred_fallthru
          _
      $region60: #{tpu_custom_call.1} parent=5 // pred_fallthru
        _
    $region6: #{tpu_custom_call.1} parent=1 // loop_footer
      %s22 = sadd.s32 1, %s18
    $region7: #{tpu_custom_call.1} parent=1 // loop_footer_branch
      %17 = sbr.rel target = $region3
    $region8: #{tpu_custom_call.1} parent=1 // loop_exit
      _
    %780 = vsyncpa [#allocation3], 1
    %s781 = scalar_lea.sflag [#allocation3], 1
    %782 = vsyncpa %s781, 1
    %783 = vsyncpa [#allocation6], 1
    %784 = vsyncpa [#allocation9], 1
    %785 = vsyncpa [#allocation4], 1
    %s786 = scalar_lea.sflag [#allocation4], 1
    %787 = vsyncpa %s786, 1

</llo_original>
